<compile_context>
chip_gen: v6e
topology: v6e:2x2x1
jax: 0.10.0
libtpu: 0.0.40
codegen_flags: <defaults>
</compile_context>

<pallas_src>
import jax
import jax.numpy as jnp
from jax import lax
from jax.experimental import pallas as pl
from jax.experimental.pallas import tpu as pltpu

IN_F, H1, H2, OUT_F = 4, 7, 7, 3
_LANES = 128   # batch elements per lane row
_CHUNK = 8     # sublane rows per inner-loop step (one full 8x128 f32 vreg / feature)

# Offsets into the packed 1-D f32 parameter vector kept in SMEM.
_W1_OFF = 0
_B1_OFF = _W1_OFF + IN_F * H1      # 28
_W2_OFF = _B1_OFF + H1             # 35
_B2_OFF = _W2_OFF + H1 * H2        # 84
_W3_OFF = _B2_OFF + H2             # 91
_B3_OFF = _W3_OFF + H2 * OUT_F     # 112
_P_LEN = _B3_OFF + OUT_F           # 115


def _mlp_kernel(p_ref, x_ref, o_ref):
    # p_ref: (115,) f32 in SMEM (all weights + biases, packed)
    # x_ref: (IN_F, R, 128) f32 in VMEM, batch on (rows, lanes)
    # o_ref: (OUT_F, R, 128) f32 in VMEM
    rows = x_ref.shape[1]
    n_chunks = rows // _CHUNK

    # Hoist all SMEM scalar reads out of the chunk loop (loop-invariant).
    w = [p_ref[i] for i in range(_P_LEN)]

    def layer(xs, w_off, b_off, in_f, out_f, relu):
        # out[j] = act(sum_k w[k, j] * xs[k] + b[j]) -- VPU broadcast-FMAs on
        # full (CHUNK, 128) slabs; the MXU is never touched.
        outs = []
        for j in range(out_f):
            acc = xs[0] * w[w_off + j]
            for k in range(1, in_f):
                acc = acc + xs[k] * w[w_off + k * out_f + j]
            acc = acc + w[b_off + j]
            if relu:
                acc = jnp.maximum(acc, 0.0)
            outs.append(acc)
        return outs

    def process_chunk(c):
        if isinstance(c, int):
            r0 = c * _CHUNK
        else:
            r0 = pl.multiple_of(c * _CHUNK, _CHUNK)
        xs = [x_ref[k, pl.ds(r0, _CHUNK), :] for k in range(IN_F)]  # 4 x (8, 128)
        h1 = layer(xs, _W1_OFF, _B1_OFF, IN_F, H1, True)
        h2 = layer(h1, _W2_OFF, _B2_OFF, H1, H2, True)
        out = layer(h2, _W3_OFF, _B3_OFF, H2, OUT_F, False)
        for j in range(OUT_F):
            # Contiguous, unmasked (8, 128) store per output feature.
            o_ref[j, pl.ds(r0, _CHUNK), :] = out[j]

    if n_chunks <= 2:
        for c in range(n_chunks):
            process_chunk(c)
    else:
        def body(c, carry):
            process_chunk(c)
            return carry
        lax.fori_loop(0, n_chunks, body, 0)


def net_forward(x, params, *, max_rows_per_tile=1024):
    """x: (B, 4) float32. Returns (B, 3) float32 logits."""
    w1, b1, w2, b2, w3, b3 = params
    B, f_in = x.shape
    assert f_in == IN_F

    # Pack all parameters into one small SMEM-resident constant buffer.
    p = jnp.concatenate([w1.reshape(-1), b1.reshape(-1),
                         w2.reshape(-1), b2.reshape(-1),
                         w3.reshape(-1), b3.reshape(-1)]).astype(jnp.float32)

    # Batch layout: pad to a whole number of (8, 128) slabs, then tile the
    # sublane-row axis. Tile sized so the grid has >= 2 steps when possible
    # (v7x has 2 TCs) and VMEM stays small (R=1024 -> ~7 MiB double-buffered).
    n_rows = pl.cdiv(B, _LANES)
    rows8 = pl.cdiv(n_rows, _CHUNK) * _CHUNK
    if rows8 <= _CHUNK:
        tile_rows = rows8
    else:
        half = pl.cdiv(pl.cdiv(rows8, 2), _CHUNK) * _CHUNK
        tile_rows = max(_CHUNK, min(max_rows_per_tile, half))
    rows_total = pl.cdiv(rows8, tile_rows) * tile_rows
    bp = rows_total * _LANES

    # Single layout pass: transpose (B,4) -> (4,B), pad tail lanes, reshape
    # to (IN_F, rows, 128). Padded lanes are garbage-in/garbage-out and get
    # sliced off below (computation is purely per-lane).
    x_t = jnp.transpose(x.astype(jnp.float32))      # (IN_F, B)
    if bp != B:
        x_t = jnp.pad(x_t, ((0, 0), (0, bp - B)))
    x_t = x_t.reshape(IN_F, rows_total, _LANES)

    grid = (rows_total // tile_rows,)

    out_t = pl.pallas_call(
        _mlp_kernel,
        out_shape=jax.ShapeDtypeStruct((OUT_F, rows_total, _LANES), jnp.float32),
        grid=grid,
        in_specs=[
            # Packed params: whole (tiny) array in SMEM, constant across steps.
            pl.BlockSpec(memory_space=pltpu.MemorySpace.SMEM),
            # (4, R, 128) lane-dense activation block, tiled along the rows.
            pl.BlockSpec((IN_F, tile_rows, _LANES), lambda i: (0, i, 0)),
        ],
        out_specs=pl.BlockSpec((OUT_F, tile_rows, _LANES), lambda i: (0, i, 0)),
        compiler_params=pltpu.CompilerParams(
            dimension_semantics=("parallel",)),
    )(p, x_t)

    # Back to the torch-style (B, 3) layout, dropping batch padding.
    out = out_t.reshape(OUT_F, bp)[:, :B]
    return jnp.transpose(out)


def init_params(key):
    """Deterministic init mirroring nn.Linear shapes (stored as (in, out))."""
    k1, k2, k3, k4, k5, k6 = jax.random.split(key, 6)

    def uniform_fan_in(k, shape, fan_in):
        bound = 1.0 / jnp.sqrt(fan_in)
        return jax.random.uniform(k, shape, jnp.float32, -bound, bound)

    w1 = uniform_fan_in(k1, (IN_F, H1), 4.0)
    b1 = uniform_fan_in(k2, (1, H1), 4.0)
    w2 = uniform_fan_in(k3, (H1, H2), 7.0)
    b2 = uniform_fan_in(k4, (1, H2), 7.0)
    w3 = uniform_fan_in(k5, (H2, OUT_F), 7.0)
    b3 = uniform_fan_in(k6, (1, OUT_F), 7.0)
    return (w1, b1, w2, b2, w3, b3)


def reference_forward(x, params):
    w1, b1, w2, b2, w3, b3 = params
    h = jnp.maximum(x @ w1 + b1, 0.0)
    h = jnp.maximum(h @ w2 + b2, 0.0)
    return h @ w3 + b3


if __name__ == "__main__":
    key = jax.random.PRNGKey(0)
    kx, kp, kx2 = jax.random.split(key, 3)
    params = init_params(kp)

    # Tiny demo batch (pads up to a single (8, 128) slab, 1 grid step).
    B = 16
    x = jax.random.normal(kx, (B, IN_F), dtype=jnp.float32)
    out = jax.block_until_ready(net_forward(x, params))
    ref = reference_forward(x, params)
    assert out.shape == (B, OUT_F)
    assert jnp.allclose(out, ref, atol=1e-5, rtol=1e-5)

    # Larger batch: exercises a 2-step grid and the in-kernel chunk loop.
    B2 = 8192
    x2 = jax.random.normal(kx2, (B2, IN_F), dtype=jnp.float32)
    out2 = jax.block_until_ready(net_forward(x2, params))
    ref2 = reference_forward(x2, params)
    assert out2.shape == (B2, OUT_F)
    assert jnp.allclose(out2, ref2, atol=1e-5, rtol=1e-5)

    print("KERNEL_OK")
</pallas_src>

<mosaic_0001>
module attributes {stable_mosaic.version = 11 : i64} {
  func.func @_mlp_kernel(%arg0: i32, %arg1: memref<115xf32, #tpu.memory_space<smem>>, %arg2: memref<4x8x128xf32, #tpu.memory_space<vmem>>, %arg3: memref<3x8x128xf32, #tpu.memory_space<vmem>>) attributes {dimension_semantics = [#tpu.dimension_semantics<parallel>], iteration_bounds = array<i64: 1>, scalar_prefetch = 0 : i64, scratch_operands = 0 : i64, tpu.core_type = #tpu.core_type<tc>, window_params = [{transform_indices = @transform_0, window_bounds = array<i64: 115>}, {transform_indices = @transform_1, window_bounds = array<i64: 4, 8, 128>}, {transform_indices = @transform_2, window_bounds = array<i64: 3, 8, 128>}]} {
    %c0 = arith.constant 0 : index
    %0 = memref.load %arg1[%c0] : memref<115xf32, #tpu.memory_space<smem>>
    %c1 = arith.constant 1 : index
    %1 = memref.load %arg1[%c1] : memref<115xf32, #tpu.memory_space<smem>>
    %c2 = arith.constant 2 : index
    %2 = memref.load %arg1[%c2] : memref<115xf32, #tpu.memory_space<smem>>
    %c3 = arith.constant 3 : index
    %3 = memref.load %arg1[%c3] : memref<115xf32, #tpu.memory_space<smem>>
    %c4 = arith.constant 4 : index
    %4 = memref.load %arg1[%c4] : memref<115xf32, #tpu.memory_space<smem>>
    %c5 = arith.constant 5 : index
    %5 = memref.load %arg1[%c5] : memref<115xf32, #tpu.memory_space<smem>>
    %c6 = arith.constant 6 : index
    %6 = memref.load %arg1[%c6] : memref<115xf32, #tpu.memory_space<smem>>
    %c7 = arith.constant 7 : index
    %7 = memref.load %arg1[%c7] : memref<115xf32, #tpu.memory_space<smem>>
    %c8 = arith.constant 8 : index
    %8 = memref.load %arg1[%c8] : memref<115xf32, #tpu.memory_space<smem>>
    %c9 = arith.constant 9 : index
    %9 = memref.load %arg1[%c9] : memref<115xf32, #tpu.memory_space<smem>>
    %c10 = arith.constant 10 : index
    %10 = memref.load %arg1[%c10] : memref<115xf32, #tpu.memory_space<smem>>
    %c11 = arith.constant 11 : index
    %11 = memref.load %arg1[%c11] : memref<115xf32, #tpu.memory_space<smem>>
    %c12 = arith.constant 12 : index
    %12 = memref.load %arg1[%c12] : memref<115xf32, #tpu.memory_space<smem>>
    %c13 = arith.constant 13 : index
    %13 = memref.load %arg1[%c13] : memref<115xf32, #tpu.memory_space<smem>>
    %c14 = arith.constant 14 : index
    %14 = memref.load %arg1[%c14] : memref<115xf32, #tpu.memory_space<smem>>
    %c15 = arith.constant 15 : index
    %15 = memref.load %arg1[%c15] : memref<115xf32, #tpu.memory_space<smem>>
    %c16 = arith.constant 16 : index
    %16 = memref.load %arg1[%c16] : memref<115xf32, #tpu.memory_space<smem>>
    %c17 = arith.constant 17 : index
    %17 = memref.load %arg1[%c17] : memref<115xf32, #tpu.memory_space<smem>>
    %c18 = arith.constant 18 : index
    %18 = memref.load %arg1[%c18] : memref<115xf32, #tpu.memory_space<smem>>
    %c19 = arith.constant 19 : index
    %19 = memref.load %arg1[%c19] : memref<115xf32, #tpu.memory_space<smem>>
    %c20 = arith.constant 20 : index
    %20 = memref.load %arg1[%c20] : memref<115xf32, #tpu.memory_space<smem>>
    %c21 = arith.constant 21 : index
    %21 = memref.load %arg1[%c21] : memref<115xf32, #tpu.memory_space<smem>>
    %c22 = arith.constant 22 : index
    %22 = memref.load %arg1[%c22] : memref<115xf32, #tpu.memory_space<smem>>
    %c23 = arith.constant 23 : index
    %23 = memref.load %arg1[%c23] : memref<115xf32, #tpu.memory_space<smem>>
    %c24 = arith.constant 24 : index
    %24 = memref.load %arg1[%c24] : memref<115xf32, #tpu.memory_space<smem>>
    %c25 = arith.constant 25 : index
    %25 = memref.load %arg1[%c25] : memref<115xf32, #tpu.memory_space<smem>>
    %c26 = arith.constant 26 : index
    %26 = memref.load %arg1[%c26] : memref<115xf32, #tpu.memory_space<smem>>
    %c27 = arith.constant 27 : index
    %27 = memref.load %arg1[%c27] : memref<115xf32, #tpu.memory_space<smem>>
    %c28 = arith.constant 28 : index
    %28 = memref.load %arg1[%c28] : memref<115xf32, #tpu.memory_space<smem>>
    %c29 = arith.constant 29 : index
    %29 = memref.load %arg1[%c29] : memref<115xf32, #tpu.memory_space<smem>>
    %c30 = arith.constant 30 : index
    %30 = memref.load %arg1[%c30] : memref<115xf32, #tpu.memory_space<smem>>
    %c31 = arith.constant 31 : index
    %31 = memref.load %arg1[%c31] : memref<115xf32, #tpu.memory_space<smem>>
    %c32 = arith.constant 32 : index
    %32 = memref.load %arg1[%c32] : memref<115xf32, #tpu.memory_space<smem>>
    %c33 = arith.constant 33 : index
    %33 = memref.load %arg1[%c33] : memref<115xf32, #tpu.memory_space<smem>>
    %c34 = arith.constant 34 : index
    %34 = memref.load %arg1[%c34] : memref<115xf32, #tpu.memory_space<smem>>
    %c35 = arith.constant 35 : index
    %35 = memref.load %arg1[%c35] : memref<115xf32, #tpu.memory_space<smem>>
    %c36 = arith.constant 36 : index
    %36 = memref.load %arg1[%c36] : memref<115xf32, #tpu.memory_space<smem>>
    %c37 = arith.constant 37 : index
    %37 = memref.load %arg1[%c37] : memref<115xf32, #tpu.memory_space<smem>>
    %c38 = arith.constant 38 : index
    %38 = memref.load %arg1[%c38] : memref<115xf32, #tpu.memory_space<smem>>
    %c39 = arith.constant 39 : index
    %39 = memref.load %arg1[%c39] : memref<115xf32, #tpu.memory_space<smem>>
    %c40 = arith.constant 40 : index
    %40 = memref.load %arg1[%c40] : memref<115xf32, #tpu.memory_space<smem>>
    %c41 = arith.constant 41 : index
    %41 = memref.load %arg1[%c41] : memref<115xf32, #tpu.memory_space<smem>>
    %c42 = arith.constant 42 : index
    %42 = memref.load %arg1[%c42] : memref<115xf32, #tpu.memory_space<smem>>
    %c43 = arith.constant 43 : index
    %43 = memref.load %arg1[%c43] : memref<115xf32, #tpu.memory_space<smem>>
    %c44 = arith.constant 44 : index
    %44 = memref.load %arg1[%c44] : memref<115xf32, #tpu.memory_space<smem>>
    %c45 = arith.constant 45 : index
    %45 = memref.load %arg1[%c45] : memref<115xf32, #tpu.memory_space<smem>>
    %c46 = arith.constant 46 : index
    %46 = memref.load %arg1[%c46] : memref<115xf32, #tpu.memory_space<smem>>
    %c47 = arith.constant 47 : index
    %47 = memref.load %arg1[%c47] : memref<115xf32, #tpu.memory_space<smem>>
    %c48 = arith.constant 48 : index
    %48 = memref.load %arg1[%c48] : memref<115xf32, #tpu.memory_space<smem>>
    %c49 = arith.constant 49 : index
    %49 = memref.load %arg1[%c49] : memref<115xf32, #tpu.memory_space<smem>>
    %c50 = arith.constant 50 : index
    %50 = memref.load %arg1[%c50] : memref<115xf32, #tpu.memory_space<smem>>
    %c51 = arith.constant 51 : index
    %51 = memref.load %arg1[%c51] : memref<115xf32, #tpu.memory_space<smem>>
    %c52 = arith.constant 52 : index
    %52 = memref.load %arg1[%c52] : memref<115xf32, #tpu.memory_space<smem>>
    %c53 = arith.constant 53 : index
    %53 = memref.load %arg1[%c53] : memref<115xf32, #tpu.memory_space<smem>>
    %c54 = arith.constant 54 : index
    %54 = memref.load %arg1[%c54] : memref<115xf32, #tpu.memory_space<smem>>
    %c55 = arith.constant 55 : index
    %55 = memref.load %arg1[%c55] : memref<115xf32, #tpu.memory_space<smem>>
    %c56 = arith.constant 56 : index
    %56 = memref.load %arg1[%c56] : memref<115xf32, #tpu.memory_space<smem>>
    %c57 = arith.constant 57 : index
    %57 = memref.load %arg1[%c57] : memref<115xf32, #tpu.memory_space<smem>>
    %c58 = arith.constant 58 : index
    %58 = memref.load %arg1[%c58] : memref<115xf32, #tpu.memory_space<smem>>
    %c59 = arith.constant 59 : index
    %59 = memref.load %arg1[%c59] : memref<115xf32, #tpu.memory_space<smem>>
    %c60 = arith.constant 60 : index
    %60 = memref.load %arg1[%c60] : memref<115xf32, #tpu.memory_space<smem>>
    %c61 = arith.constant 61 : index
    %61 = memref.load %arg1[%c61] : memref<115xf32, #tpu.memory_space<smem>>
    %c62 = arith.constant 62 : index
    %62 = memref.load %arg1[%c62] : memref<115xf32, #tpu.memory_space<smem>>
    %c63 = arith.constant 63 : index
    %63 = memref.load %arg1[%c63] : memref<115xf32, #tpu.memory_space<smem>>
    %c64 = arith.constant 64 : index
    %64 = memref.load %arg1[%c64] : memref<115xf32, #tpu.memory_space<smem>>
    %c65 = arith.constant 65 : index
    %65 = memref.load %arg1[%c65] : memref<115xf32, #tpu.memory_space<smem>>
    %c66 = arith.constant 66 : index
    %66 = memref.load %arg1[%c66] : memref<115xf32, #tpu.memory_space<smem>>
    %c67 = arith.constant 67 : index
    %67 = memref.load %arg1[%c67] : memref<115xf32, #tpu.memory_space<smem>>
    %c68 = arith.constant 68 : index
    %68 = memref.load %arg1[%c68] : memref<115xf32, #tpu.memory_space<smem>>
    %c69 = arith.constant 69 : index
    %69 = memref.load %arg1[%c69] : memref<115xf32, #tpu.memory_space<smem>>
    %c70 = arith.constant 70 : index
    %70 = memref.load %arg1[%c70] : memref<115xf32, #tpu.memory_space<smem>>
    %c71 = arith.constant 71 : index
    %71 = memref.load %arg1[%c71] : memref<115xf32, #tpu.memory_space<smem>>
    %c72 = arith.constant 72 : index
    %72 = memref.load %arg1[%c72] : memref<115xf32, #tpu.memory_space<smem>>
    %c73 = arith.constant 73 : index
    %73 = memref.load %arg1[%c73] : memref<115xf32, #tpu.memory_space<smem>>
    %c74 = arith.constant 74 : index
    %74 = memref.load %arg1[%c74] : memref<115xf32, #tpu.memory_space<smem>>
    %c75 = arith.constant 75 : index
    %75 = memref.load %arg1[%c75] : memref<115xf32, #tpu.memory_space<smem>>
    %c76 = arith.constant 76 : index
    %76 = memref.load %arg1[%c76] : memref<115xf32, #tpu.memory_space<smem>>
    %c77 = arith.constant 77 : index
    %77 = memref.load %arg1[%c77] : memref<115xf32, #tpu.memory_space<smem>>
    %c78 = arith.constant 78 : index
    %78 = memref.load %arg1[%c78] : memref<115xf32, #tpu.memory_space<smem>>
    %c79 = arith.constant 79 : index
    %79 = memref.load %arg1[%c79] : memref<115xf32, #tpu.memory_space<smem>>
    %c80 = arith.constant 80 : index
    %80 = memref.load %arg1[%c80] : memref<115xf32, #tpu.memory_space<smem>>
    %c81 = arith.constant 81 : index
    %81 = memref.load %arg1[%c81] : memref<115xf32, #tpu.memory_space<smem>>
    %c82 = arith.constant 82 : index
    %82 = memref.load %arg1[%c82] : memref<115xf32, #tpu.memory_space<smem>>
    %c83 = arith.constant 83 : index
    %83 = memref.load %arg1[%c83] : memref<115xf32, #tpu.memory_space<smem>>
    %c84 = arith.constant 84 : index
    %84 = memref.load %arg1[%c84] : memref<115xf32, #tpu.memory_space<smem>>
    %c85 = arith.constant 85 : index
    %85 = memref.load %arg1[%c85] : memref<115xf32, #tpu.memory_space<smem>>
    %c86 = arith.constant 86 : index
    %86 = memref.load %arg1[%c86] : memref<115xf32, #tpu.memory_space<smem>>
    %c87 = arith.constant 87 : index
    %87 = memref.load %arg1[%c87] : memref<115xf32, #tpu.memory_space<smem>>
    %c88 = arith.constant 88 : index
    %88 = memref.load %arg1[%c88] : memref<115xf32, #tpu.memory_space<smem>>
    %c89 = arith.constant 89 : index
    %89 = memref.load %arg1[%c89] : memref<115xf32, #tpu.memory_space<smem>>
    %c90 = arith.constant 90 : index
    %90 = memref.load %arg1[%c90] : memref<115xf32, #tpu.memory_space<smem>>
    %c91 = arith.constant 91 : index
    %91 = memref.load %arg1[%c91] : memref<115xf32, #tpu.memory_space<smem>>
    %c92 = arith.constant 92 : index
    %92 = memref.load %arg1[%c92] : memref<115xf32, #tpu.memory_space<smem>>
    %c93 = arith.constant 93 : index
    %93 = memref.load %arg1[%c93] : memref<115xf32, #tpu.memory_space<smem>>
    %c94 = arith.constant 94 : index
    %94 = memref.load %arg1[%c94] : memref<115xf32, #tpu.memory_space<smem>>
    %c95 = arith.constant 95 : index
    %95 = memref.load %arg1[%c95] : memref<115xf32, #tpu.memory_space<smem>>
    %c96 = arith.constant 96 : index
    %96 = memref.load %arg1[%c96] : memref<115xf32, #tpu.memory_space<smem>>
    %c97 = arith.constant 97 : index
    %97 = memref.load %arg1[%c97] : memref<115xf32, #tpu.memory_space<smem>>
    %c98 = arith.constant 98 : index
    %98 = memref.load %arg1[%c98] : memref<115xf32, #tpu.memory_space<smem>>
    %c99 = arith.constant 99 : index
    %99 = memref.load %arg1[%c99] : memref<115xf32, #tpu.memory_space<smem>>
    %c100 = arith.constant 100 : index
    %100 = memref.load %arg1[%c100] : memref<115xf32, #tpu.memory_space<smem>>
    %c101 = arith.constant 101 : index
    %101 = memref.load %arg1[%c101] : memref<115xf32, #tpu.memory_space<smem>>
    %c102 = arith.constant 102 : index
    %102 = memref.load %arg1[%c102] : memref<115xf32, #tpu.memory_space<smem>>
    %c103 = arith.constant 103 : index
    %103 = memref.load %arg1[%c103] : memref<115xf32, #tpu.memory_space<smem>>
    %c104 = arith.constant 104 : index
    %104 = memref.load %arg1[%c104] : memref<115xf32, #tpu.memory_space<smem>>
    %c105 = arith.constant 105 : index
    %105 = memref.load %arg1[%c105] : memref<115xf32, #tpu.memory_space<smem>>
    %c106 = arith.constant 106 : index
    %106 = memref.load %arg1[%c106] : memref<115xf32, #tpu.memory_space<smem>>
    %c107 = arith.constant 107 : index
    %107 = memref.load %arg1[%c107] : memref<115xf32, #tpu.memory_space<smem>>
    %c108 = arith.constant 108 : index
    %108 = memref.load %arg1[%c108] : memref<115xf32, #tpu.memory_space<smem>>
    %c109 = arith.constant 109 : index
    %109 = memref.load %arg1[%c109] : memref<115xf32, #tpu.memory_space<smem>>
    %c110 = arith.constant 110 : index
    %110 = memref.load %arg1[%c110] : memref<115xf32, #tpu.memory_space<smem>>
    %c111 = arith.constant 111 : index
    %111 = memref.load %arg1[%c111] : memref<115xf32, #tpu.memory_space<smem>>
    %c112 = arith.constant 112 : index
    %112 = memref.load %arg1[%c112] : memref<115xf32, #tpu.memory_space<smem>>
    %c113 = arith.constant 113 : index
    %113 = memref.load %arg1[%c113] : memref<115xf32, #tpu.memory_space<smem>>
    %c114 = arith.constant 114 : index
    %114 = memref.load %arg1[%c114] : memref<115xf32, #tpu.memory_space<smem>>
    %c0_0 = arith.constant 0 : index
    %c0_1 = arith.constant 0 : index
    %c0_2 = arith.constant 0 : index
    %115 = vector.load %arg2[%c0_0, %c0_1, %c0_2] : memref<4x8x128xf32, #tpu.memory_space<vmem>>, vector<1x8x128xf32>
    %116 = vector.shape_cast %115 : vector<1x8x128xf32> to vector<8x128xf32>
    %c1_3 = arith.constant 1 : index
    %c0_4 = arith.constant 0 : index
    %c0_5 = arith.constant 0 : index
    %117 = vector.load %arg2[%c1_3, %c0_4, %c0_5] : memref<4x8x128xf32, #tpu.memory_space<vmem>>, vector<1x8x128xf32>
    %118 = vector.shape_cast %117 : vector<1x8x128xf32> to vector<8x128xf32>
    %c2_6 = arith.constant 2 : index
    %c0_7 = arith.constant 0 : index
    %c0_8 = arith.constant 0 : index
    %119 = vector.load %arg2[%c2_6, %c0_7, %c0_8] : memref<4x8x128xf32, #tpu.memory_space<vmem>>, vector<1x8x128xf32>
    %120 = vector.shape_cast %119 : vector<1x8x128xf32> to vector<8x128xf32>
    %c3_9 = arith.constant 3 : index
    %c0_10 = arith.constant 0 : index
    %c0_11 = arith.constant 0 : index
    %121 = vector.load %arg2[%c3_9, %c0_10, %c0_11] : memref<4x8x128xf32, #tpu.memory_space<vmem>>, vector<1x8x128xf32>
    %122 = vector.shape_cast %121 : vector<1x8x128xf32> to vector<8x128xf32>
    %123 = vector.broadcast %0 : f32 to vector<8x128xf32>
    %124 = arith.mulf %116, %123 : vector<8x128xf32>
    %125 = vector.broadcast %7 : f32 to vector<8x128xf32>
    %126 = arith.mulf %118, %125 : vector<8x128xf32>
    %127 = arith.addf %124, %126 : vector<8x128xf32>
    %128 = vector.broadcast %14 : f32 to vector<8x128xf32>
    %129 = arith.mulf %120, %128 : vector<8x128xf32>
    %130 = arith.addf %127, %129 : vector<8x128xf32>
    %131 = vector.broadcast %21 : f32 to vector<8x128xf32>
    %132 = arith.mulf %122, %131 : vector<8x128xf32>
    %133 = arith.addf %130, %132 : vector<8x128xf32>
    %134 = vector.broadcast %28 : f32 to vector<8x128xf32>
    %135 = arith.addf %133, %134 : vector<8x128xf32>
    %cst = arith.constant 0.000000e+00 : f32
    %136 = vector.broadcast %cst : f32 to vector<8x128xf32>
    %137 = arith.maximumf %135, %136 : vector<8x128xf32>
    %138 = vector.broadcast %1 : f32 to vector<8x128xf32>
    %139 = arith.mulf %116, %138 : vector<8x128xf32>
    %140 = vector.broadcast %8 : f32 to vector<8x128xf32>
    %141 = arith.mulf %118, %140 : vector<8x128xf32>
    %142 = arith.addf %139, %141 : vector<8x128xf32>
    %143 = vector.broadcast %15 : f32 to vector<8x128xf32>
    %144 = arith.mulf %120, %143 : vector<8x128xf32>
    %145 = arith.addf %142, %144 : vector<8x128xf32>
    %146 = vector.broadcast %22 : f32 to vector<8x128xf32>
    %147 = arith.mulf %122, %146 : vector<8x128xf32>
    %148 = arith.addf %145, %147 : vector<8x128xf32>
    %149 = vector.broadcast %29 : f32 to vector<8x128xf32>
    %150 = arith.addf %148, %149 : vector<8x128xf32>
    %cst_12 = arith.constant 0.000000e+00 : f32
    %151 = vector.broadcast %cst_12 : f32 to vector<8x128xf32>
    %152 = arith.maximumf %150, %151 : vector<8x128xf32>
    %153 = vector.broadcast %2 : f32 to vector<8x128xf32>
    %154 = arith.mulf %116, %153 : vector<8x128xf32>
    %155 = vector.broadcast %9 : f32 to vector<8x128xf32>
    %156 = arith.mulf %118, %155 : vector<8x128xf32>
    %157 = arith.addf %154, %156 : vector<8x128xf32>
    %158 = vector.broadcast %16 : f32 to vector<8x128xf32>
    %159 = arith.mulf %120, %158 : vector<8x128xf32>
    %160 = arith.addf %157, %159 : vector<8x128xf32>
    %161 = vector.broadcast %23 : f32 to vector<8x128xf32>
    %162 = arith.mulf %122, %161 : vector<8x128xf32>
    %163 = arith.addf %160, %162 : vector<8x128xf32>
    %164 = vector.broadcast %30 : f32 to vector<8x128xf32>
    %165 = arith.addf %163, %164 : vector<8x128xf32>
    %cst_13 = arith.constant 0.000000e+00 : f32
    %166 = vector.broadcast %cst_13 : f32 to vector<8x128xf32>
    %167 = arith.maximumf %165, %166 : vector<8x128xf32>
    %168 = vector.broadcast %3 : f32 to vector<8x128xf32>
    %169 = arith.mulf %116, %168 : vector<8x128xf32>
    %170 = vector.broadcast %10 : f32 to vector<8x128xf32>
    %171 = arith.mulf %118, %170 : vector<8x128xf32>
    %172 = arith.addf %169, %171 : vector<8x128xf32>
    %173 = vector.broadcast %17 : f32 to vector<8x128xf32>
    %174 = arith.mulf %120, %173 : vector<8x128xf32>
    %175 = arith.addf %172, %174 : vector<8x128xf32>
    %176 = vector.broadcast %24 : f32 to vector<8x128xf32>
    %177 = arith.mulf %122, %176 : vector<8x128xf32>
    %178 = arith.addf %175, %177 : vector<8x128xf32>
    %179 = vector.broadcast %31 : f32 to vector<8x128xf32>
    %180 = arith.addf %178, %179 : vector<8x128xf32>
    %cst_14 = arith.constant 0.000000e+00 : f32
    %181 = vector.broadcast %cst_14 : f32 to vector<8x128xf32>
    %182 = arith.maximumf %180, %181 : vector<8x128xf32>
    %183 = vector.broadcast %4 : f32 to vector<8x128xf32>
    %184 = arith.mulf %116, %183 : vector<8x128xf32>
    %185 = vector.broadcast %11 : f32 to vector<8x128xf32>
    %186 = arith.mulf %118, %185 : vector<8x128xf32>
    %187 = arith.addf %184, %186 : vector<8x128xf32>
    %188 = vector.broadcast %18 : f32 to vector<8x128xf32>
    %189 = arith.mulf %120, %188 : vector<8x128xf32>
    %190 = arith.addf %187, %189 : vector<8x128xf32>
    %191 = vector.broadcast %25 : f32 to vector<8x128xf32>
    %192 = arith.mulf %122, %191 : vector<8x128xf32>
    %193 = arith.addf %190, %192 : vector<8x128xf32>
    %194 = vector.broadcast %32 : f32 to vector<8x128xf32>
    %195 = arith.addf %193, %194 : vector<8x128xf32>
    %cst_15 = arith.constant 0.000000e+00 : f32
    %196 = vector.broadcast %cst_15 : f32 to vector<8x128xf32>
    %197 = arith.maximumf %195, %196 : vector<8x128xf32>
    %198 = vector.broadcast %5 : f32 to vector<8x128xf32>
    %199 = arith.mulf %116, %198 : vector<8x128xf32>
    %200 = vector.broadcast %12 : f32 to vector<8x128xf32>
    %201 = arith.mulf %118, %200 : vector<8x128xf32>
    %202 = arith.addf %199, %201 : vector<8x128xf32>
    %203 = vector.broadcast %19 : f32 to vector<8x128xf32>
    %204 = arith.mulf %120, %203 : vector<8x128xf32>
    %205 = arith.addf %202, %204 : vector<8x128xf32>
    %206 = vector.broadcast %26 : f32 to vector<8x128xf32>
    %207 = arith.mulf %122, %206 : vector<8x128xf32>
    %208 = arith.addf %205, %207 : vector<8x128xf32>
    %209 = vector.broadcast %33 : f32 to vector<8x128xf32>
    %210 = arith.addf %208, %209 : vector<8x128xf32>
    %cst_16 = arith.constant 0.000000e+00 : f32
    %211 = vector.broadcast %cst_16 : f32 to vector<8x128xf32>
    %212 = arith.maximumf %210, %211 : vector<8x128xf32>
    %213 = vector.broadcast %6 : f32 to vector<8x128xf32>
    %214 = arith.mulf %116, %213 : vector<8x128xf32>
    %215 = vector.broadcast %13 : f32 to vector<8x128xf32>
    %216 = arith.mulf %118, %215 : vector<8x128xf32>
    %217 = arith.addf %214, %216 : vector<8x128xf32>
    %218 = vector.broadcast %20 : f32 to vector<8x128xf32>
    %219 = arith.mulf %120, %218 : vector<8x128xf32>
    %220 = arith.addf %217, %219 : vector<8x128xf32>
    %221 = vector.broadcast %27 : f32 to vector<8x128xf32>
    %222 = arith.mulf %122, %221 : vector<8x128xf32>
    %223 = arith.addf %220, %222 : vector<8x128xf32>
    %224 = vector.broadcast %34 : f32 to vector<8x128xf32>
    %225 = arith.addf %223, %224 : vector<8x128xf32>
    %cst_17 = arith.constant 0.000000e+00 : f32
    %226 = vector.broadcast %cst_17 : f32 to vector<8x128xf32>
    %227 = arith.maximumf %225, %226 : vector<8x128xf32>
    %228 = vector.broadcast %35 : f32 to vector<8x128xf32>
    %229 = arith.mulf %137, %228 : vector<8x128xf32>
    %230 = vector.broadcast %42 : f32 to vector<8x128xf32>
    %231 = arith.mulf %152, %230 : vector<8x128xf32>
    %232 = arith.addf %229, %231 : vector<8x128xf32>
    %233 = vector.broadcast %49 : f32 to vector<8x128xf32>
    %234 = arith.mulf %167, %233 : vector<8x128xf32>
    %235 = arith.addf %232, %234 : vector<8x128xf32>
    %236 = vector.broadcast %56 : f32 to vector<8x128xf32>
    %237 = arith.mulf %182, %236 : vector<8x128xf32>
    %238 = arith.addf %235, %237 : vector<8x128xf32>
    %239 = vector.broadcast %63 : f32 to vector<8x128xf32>
    %240 = arith.mulf %197, %239 : vector<8x128xf32>
    %241 = arith.addf %238, %240 : vector<8x128xf32>
    %242 = vector.broadcast %70 : f32 to vector<8x128xf32>
    %243 = arith.mulf %212, %242 : vector<8x128xf32>
    %244 = arith.addf %241, %243 : vector<8x128xf32>
    %245 = vector.broadcast %77 : f32 to vector<8x128xf32>
    %246 = arith.mulf %227, %245 : vector<8x128xf32>
    %247 = arith.addf %244, %246 : vector<8x128xf32>
    %248 = vector.broadcast %84 : f32 to vector<8x128xf32>
    %249 = arith.addf %247, %248 : vector<8x128xf32>
    %cst_18 = arith.constant 0.000000e+00 : f32
    %250 = vector.broadcast %cst_18 : f32 to vector<8x128xf32>
    %251 = arith.maximumf %249, %250 : vector<8x128xf32>
    %252 = vector.broadcast %36 : f32 to vector<8x128xf32>
    %253 = arith.mulf %137, %252 : vector<8x128xf32>
    %254 = vector.broadcast %43 : f32 to vector<8x128xf32>
    %255 = arith.mulf %152, %254 : vector<8x128xf32>
    %256 = arith.addf %253, %255 : vector<8x128xf32>
    %257 = vector.broadcast %50 : f32 to vector<8x128xf32>
    %258 = arith.mulf %167, %257 : vector<8x128xf32>
    %259 = arith.addf %256, %258 : vector<8x128xf32>
    %260 = vector.broadcast %57 : f32 to vector<8x128xf32>
    %261 = arith.mulf %182, %260 : vector<8x128xf32>
    %262 = arith.addf %259, %261 : vector<8x128xf32>
    %263 = vector.broadcast %64 : f32 to vector<8x128xf32>
    %264 = arith.mulf %197, %263 : vector<8x128xf32>
    %265 = arith.addf %262, %264 : vector<8x128xf32>
    %266 = vector.broadcast %71 : f32 to vector<8x128xf32>
    %267 = arith.mulf %212, %266 : vector<8x128xf32>
    %268 = arith.addf %265, %267 : vector<8x128xf32>
    %269 = vector.broadcast %78 : f32 to vector<8x128xf32>
    %270 = arith.mulf %227, %269 : vector<8x128xf32>
    %271 = arith.addf %268, %270 : vector<8x128xf32>
    %272 = vector.broadcast %85 : f32 to vector<8x128xf32>
    %273 = arith.addf %271, %272 : vector<8x128xf32>
    %cst_19 = arith.constant 0.000000e+00 : f32
    %274 = vector.broadcast %cst_19 : f32 to vector<8x128xf32>
    %275 = arith.maximumf %273, %274 : vector<8x128xf32>
    %276 = vector.broadcast %37 : f32 to vector<8x128xf32>
    %277 = arith.mulf %137, %276 : vector<8x128xf32>
    %278 = vector.broadcast %44 : f32 to vector<8x128xf32>
    %279 = arith.mulf %152, %278 : vector<8x128xf32>
    %280 = arith.addf %277, %279 : vector<8x128xf32>
    %281 = vector.broadcast %51 : f32 to vector<8x128xf32>
    %282 = arith.mulf %167, %281 : vector<8x128xf32>
    %283 = arith.addf %280, %282 : vector<8x128xf32>
    %284 = vector.broadcast %58 : f32 to vector<8x128xf32>
    %285 = arith.mulf %182, %284 : vector<8x128xf32>
    %286 = arith.addf %283, %285 : vector<8x128xf32>
    %287 = vector.broadcast %65 : f32 to vector<8x128xf32>
    %288 = arith.mulf %197, %287 : vector<8x128xf32>
    %289 = arith.addf %286, %288 : vector<8x128xf32>
    %290 = vector.broadcast %72 : f32 to vector<8x128xf32>
    %291 = arith.mulf %212, %290 : vector<8x128xf32>
    %292 = arith.addf %289, %291 : vector<8x128xf32>
    %293 = vector.broadcast %79 : f32 to vector<8x128xf32>
    %294 = arith.mulf %227, %293 : vector<8x128xf32>
    %295 = arith.addf %292, %294 : vector<8x128xf32>
    %296 = vector.broadcast %86 : f32 to vector<8x128xf32>
    %297 = arith.addf %295, %296 : vector<8x128xf32>
    %cst_20 = arith.constant 0.000000e+00 : f32
    %298 = vector.broadcast %cst_20 : f32 to vector<8x128xf32>
    %299 = arith.maximumf %297, %298 : vector<8x128xf32>
    %300 = vector.broadcast %38 : f32 to vector<8x128xf32>
    %301 = arith.mulf %137, %300 : vector<8x128xf32>
    %302 = vector.broadcast %45 : f32 to vector<8x128xf32>
    %303 = arith.mulf %152, %302 : vector<8x128xf32>
    %304 = arith.addf %301, %303 : vector<8x128xf32>
    %305 = vector.broadcast %52 : f32 to vector<8x128xf32>
    %306 = arith.mulf %167, %305 : vector<8x128xf32>
    %307 = arith.addf %304, %306 : vector<8x128xf32>
    %308 = vector.broadcast %59 : f32 to vector<8x128xf32>
    %309 = arith.mulf %182, %308 : vector<8x128xf32>
    %310 = arith.addf %307, %309 : vector<8x128xf32>
    %311 = vector.broadcast %66 : f32 to vector<8x128xf32>
    %312 = arith.mulf %197, %311 : vector<8x128xf32>
    %313 = arith.addf %310, %312 : vector<8x128xf32>
    %314 = vector.broadcast %73 : f32 to vector<8x128xf32>
    %315 = arith.mulf %212, %314 : vector<8x128xf32>
    %316 = arith.addf %313, %315 : vector<8x128xf32>
    %317 = vector.broadcast %80 : f32 to vector<8x128xf32>
    %318 = arith.mulf %227, %317 : vector<8x128xf32>
    %319 = arith.addf %316, %318 : vector<8x128xf32>
    %320 = vector.broadcast %87 : f32 to vector<8x128xf32>
    %321 = arith.addf %319, %320 : vector<8x128xf32>
    %cst_21 = arith.constant 0.000000e+00 : f32
    %322 = vector.broadcast %cst_21 : f32 to vector<8x128xf32>
    %323 = arith.maximumf %321, %322 : vector<8x128xf32>
    %324 = vector.broadcast %39 : f32 to vector<8x128xf32>
    %325 = arith.mulf %137, %324 : vector<8x128xf32>
    %326 = vector.broadcast %46 : f32 to vector<8x128xf32>
    %327 = arith.mulf %152, %326 : vector<8x128xf32>
    %328 = arith.addf %325, %327 : vector<8x128xf32>
    %329 = vector.broadcast %53 : f32 to vector<8x128xf32>
    %330 = arith.mulf %167, %329 : vector<8x128xf32>
    %331 = arith.addf %328, %330 : vector<8x128xf32>
    %332 = vector.broadcast %60 : f32 to vector<8x128xf32>
    %333 = arith.mulf %182, %332 : vector<8x128xf32>
    %334 = arith.addf %331, %333 : vector<8x128xf32>
    %335 = vector.broadcast %67 : f32 to vector<8x128xf32>
    %336 = arith.mulf %197, %335 : vector<8x128xf32>
    %337 = arith.addf %334, %336 : vector<8x128xf32>
    %338 = vector.broadcast %74 : f32 to vector<8x128xf32>
    %339 = arith.mulf %212, %338 : vector<8x128xf32>
    %340 = arith.addf %337, %339 : vector<8x128xf32>
    %341 = vector.broadcast %81 : f32 to vector<8x128xf32>
    %342 = arith.mulf %227, %341 : vector<8x128xf32>
    %343 = arith.addf %340, %342 : vector<8x128xf32>
    %344 = vector.broadcast %88 : f32 to vector<8x128xf32>
    %345 = arith.addf %343, %344 : vector<8x128xf32>
    %cst_22 = arith.constant 0.000000e+00 : f32
    %346 = vector.broadcast %cst_22 : f32 to vector<8x128xf32>
    %347 = arith.maximumf %345, %346 : vector<8x128xf32>
    %348 = vector.broadcast %40 : f32 to vector<8x128xf32>
    %349 = arith.mulf %137, %348 : vector<8x128xf32>
    %350 = vector.broadcast %47 : f32 to vector<8x128xf32>
    %351 = arith.mulf %152, %350 : vector<8x128xf32>
    %352 = arith.addf %349, %351 : vector<8x128xf32>
    %353 = vector.broadcast %54 : f32 to vector<8x128xf32>
    %354 = arith.mulf %167, %353 : vector<8x128xf32>
    %355 = arith.addf %352, %354 : vector<8x128xf32>
    %356 = vector.broadcast %61 : f32 to vector<8x128xf32>
    %357 = arith.mulf %182, %356 : vector<8x128xf32>
    %358 = arith.addf %355, %357 : vector<8x128xf32>
    %359 = vector.broadcast %68 : f32 to vector<8x128xf32>
    %360 = arith.mulf %197, %359 : vector<8x128xf32>
    %361 = arith.addf %358, %360 : vector<8x128xf32>
    %362 = vector.broadcast %75 : f32 to vector<8x128xf32>
    %363 = arith.mulf %212, %362 : vector<8x128xf32>
    %364 = arith.addf %361, %363 : vector<8x128xf32>
    %365 = vector.broadcast %82 : f32 to vector<8x128xf32>
    %366 = arith.mulf %227, %365 : vector<8x128xf32>
    %367 = arith.addf %364, %366 : vector<8x128xf32>
    %368 = vector.broadcast %89 : f32 to vector<8x128xf32>
    %369 = arith.addf %367, %368 : vector<8x128xf32>
    %cst_23 = arith.constant 0.000000e+00 : f32
    %370 = vector.broadcast %cst_23 : f32 to vector<8x128xf32>
    %371 = arith.maximumf %369, %370 : vector<8x128xf32>
    %372 = vector.broadcast %41 : f32 to vector<8x128xf32>
    %373 = arith.mulf %137, %372 : vector<8x128xf32>
    %374 = vector.broadcast %48 : f32 to vector<8x128xf32>
    %375 = arith.mulf %152, %374 : vector<8x128xf32>
    %376 = arith.addf %373, %375 : vector<8x128xf32>
    %377 = vector.broadcast %55 : f32 to vector<8x128xf32>
    %378 = arith.mulf %167, %377 : vector<8x128xf32>
    %379 = arith.addf %376, %378 : vector<8x128xf32>
    %380 = vector.broadcast %62 : f32 to vector<8x128xf32>
    %381 = arith.mulf %182, %380 : vector<8x128xf32>
    %382 = arith.addf %379, %381 : vector<8x128xf32>
    %383 = vector.broadcast %69 : f32 to vector<8x128xf32>
    %384 = arith.mulf %197, %383 : vector<8x128xf32>
    %385 = arith.addf %382, %384 : vector<8x128xf32>
    %386 = vector.broadcast %76 : f32 to vector<8x128xf32>
    %387 = arith.mulf %212, %386 : vector<8x128xf32>
    %388 = arith.addf %385, %387 : vector<8x128xf32>
    %389 = vector.broadcast %83 : f32 to vector<8x128xf32>
    %390 = arith.mulf %227, %389 : vector<8x128xf32>
    %391 = arith.addf %388, %390 : vector<8x128xf32>
    %392 = vector.broadcast %90 : f32 to vector<8x128xf32>
    %393 = arith.addf %391, %392 : vector<8x128xf32>
    %cst_24 = arith.constant 0.000000e+00 : f32
    %394 = vector.broadcast %cst_24 : f32 to vector<8x128xf32>
    %395 = arith.maximumf %393, %394 : vector<8x128xf32>
    %396 = vector.broadcast %91 : f32 to vector<8x128xf32>
    %397 = arith.mulf %251, %396 : vector<8x128xf32>
    %398 = vector.broadcast %94 : f32 to vector<8x128xf32>
    %399 = arith.mulf %275, %398 : vector<8x128xf32>
    %400 = arith.addf %397, %399 : vector<8x128xf32>
    %401 = vector.broadcast %97 : f32 to vector<8x128xf32>
    %402 = arith.mulf %299, %401 : vector<8x128xf32>
    %403 = arith.addf %400, %402 : vector<8x128xf32>
    %404 = vector.broadcast %100 : f32 to vector<8x128xf32>
    %405 = arith.mulf %323, %404 : vector<8x128xf32>
    %406 = arith.addf %403, %405 : vector<8x128xf32>
    %407 = vector.broadcast %103 : f32 to vector<8x128xf32>
    %408 = arith.mulf %347, %407 : vector<8x128xf32>
    %409 = arith.addf %406, %408 : vector<8x128xf32>
    %410 = vector.broadcast %106 : f32 to vector<8x128xf32>
    %411 = arith.mulf %371, %410 : vector<8x128xf32>
    %412 = arith.addf %409, %411 : vector<8x128xf32>
    %413 = vector.broadcast %109 : f32 to vector<8x128xf32>
    %414 = arith.mulf %395, %413 : vector<8x128xf32>
    %415 = arith.addf %412, %414 : vector<8x128xf32>
    %416 = vector.broadcast %112 : f32 to vector<8x128xf32>
    %417 = arith.addf %415, %416 : vector<8x128xf32>
    %418 = vector.broadcast %92 : f32 to vector<8x128xf32>
    %419 = arith.mulf %251, %418 : vector<8x128xf32>
    %420 = vector.broadcast %95 : f32 to vector<8x128xf32>
    %421 = arith.mulf %275, %420 : vector<8x128xf32>
    %422 = arith.addf %419, %421 : vector<8x128xf32>
    %423 = vector.broadcast %98 : f32 to vector<8x128xf32>
    %424 = arith.mulf %299, %423 : vector<8x128xf32>
    %425 = arith.addf %422, %424 : vector<8x128xf32>
    %426 = vector.broadcast %101 : f32 to vector<8x128xf32>
    %427 = arith.mulf %323, %426 : vector<8x128xf32>
    %428 = arith.addf %425, %427 : vector<8x128xf32>
    %429 = vector.broadcast %104 : f32 to vector<8x128xf32>
    %430 = arith.mulf %347, %429 : vector<8x128xf32>
    %431 = arith.addf %428, %430 : vector<8x128xf32>
    %432 = vector.broadcast %107 : f32 to vector<8x128xf32>
    %433 = arith.mulf %371, %432 : vector<8x128xf32>
    %434 = arith.addf %431, %433 : vector<8x128xf32>
    %435 = vector.broadcast %110 : f32 to vector<8x128xf32>
    %436 = arith.mulf %395, %435 : vector<8x128xf32>
    %437 = arith.addf %434, %436 : vector<8x128xf32>
    %438 = vector.broadcast %113 : f32 to vector<8x128xf32>
    %439 = arith.addf %437, %438 : vector<8x128xf32>
    %440 = vector.broadcast %93 : f32 to vector<8x128xf32>
    %441 = arith.mulf %251, %440 : vector<8x128xf32>
    %442 = vector.broadcast %96 : f32 to vector<8x128xf32>
    %443 = arith.mulf %275, %442 : vector<8x128xf32>
    %444 = arith.addf %441, %443 : vector<8x128xf32>
    %445 = vector.broadcast %99 : f32 to vector<8x128xf32>
    %446 = arith.mulf %299, %445 : vector<8x128xf32>
    %447 = arith.addf %444, %446 : vector<8x128xf32>
    %448 = vector.broadcast %102 : f32 to vector<8x128xf32>
    %449 = arith.mulf %323, %448 : vector<8x128xf32>
    %450 = arith.addf %447, %449 : vector<8x128xf32>
    %451 = vector.broadcast %105 : f32 to vector<8x128xf32>
    %452 = arith.mulf %347, %451 : vector<8x128xf32>
    %453 = arith.addf %450, %452 : vector<8x128xf32>
    %454 = vector.broadcast %108 : f32 to vector<8x128xf32>
    %455 = arith.mulf %371, %454 : vector<8x128xf32>
    %456 = arith.addf %453, %455 : vector<8x128xf32>
    %457 = vector.broadcast %111 : f32 to vector<8x128xf32>
    %458 = arith.mulf %395, %457 : vector<8x128xf32>
    %459 = arith.addf %456, %458 : vector<8x128xf32>
    %460 = vector.broadcast %114 : f32 to vector<8x128xf32>
    %461 = arith.addf %459, %460 : vector<8x128xf32>
    %c0_25 = arith.constant 0 : index
    %c0_26 = arith.constant 0 : index
    %c0_27 = arith.constant 0 : index
    %462 = vector.load %arg3[%c0_25, %c0_26, %c0_27] : memref<3x8x128xf32, #tpu.memory_space<vmem>>, vector<1x8x128xf32>
    %463 = vector.shape_cast %462 : vector<1x8x128xf32> to vector<8x128xf32>
    %464 = vector.shape_cast %417 : vector<8x128xf32> to vector<1x8x128xf32>
    tpu.vector_store %arg3[%c0_25, %c0_26, %c0_27], %464 {strides = array<i32>} : memref<3x8x128xf32, #tpu.memory_space<vmem>>, vector<1x8x128xf32>,
    %c1_28 = arith.constant 1 : index
    %c0_29 = arith.constant 0 : index
    %c0_30 = arith.constant 0 : index
    %465 = vector.load %arg3[%c1_28, %c0_29, %c0_30] : memref<3x8x128xf32, #tpu.memory_space<vmem>>, vector<1x8x128xf32>
    %466 = vector.shape_cast %465 : vector<1x8x128xf32> to vector<8x128xf32>
    %467 = vector.shape_cast %439 : vector<8x128xf32> to vector<1x8x128xf32>
    tpu.vector_store %arg3[%c1_28, %c0_29, %c0_30], %467 {strides = array<i32>} : memref<3x8x128xf32, #tpu.memory_space<vmem>>, vector<1x8x128xf32>,
    %c2_31 = arith.constant 2 : index
    %c0_32 = arith.constant 0 : index
    %c0_33 = arith.constant 0 : index
    %468 = vector.load %arg3[%c2_31, %c0_32, %c0_33] : memref<3x8x128xf32, #tpu.memory_space<vmem>>, vector<1x8x128xf32>
    %469 = vector.shape_cast %468 : vector<1x8x128xf32> to vector<8x128xf32>
    %470 = vector.shape_cast %461 : vector<8x128xf32> to vector<1x8x128xf32>
    tpu.vector_store %arg3[%c2_31, %c0_32, %c0_33], %470 {strides = array<i32>} : memref<3x8x128xf32, #tpu.memory_space<vmem>>, vector<1x8x128xf32>,
    return
  }
  func.func @transform_0(%arg0: i32) -> i32 {
    %c0_i32 = arith.constant 0 : i32
    %c0_i32_0 = arith.constant 0 : i32
    return %c0_i32 : i32
  }
  func.func @transform_1(%arg0: i32) -> (i32, i32, i32) {
    %c0_i32 = arith.constant 0 : i32
    %c0_i32_0 = arith.constant 0 : i32
    %c0_i32_1 = arith.constant 0 : i32
    return %c0_i32, %arg0, %c0_i32_0 : i32, i32, i32
  }
  func.func @transform_2(%arg0: i32) -> (i32, i32, i32) {
    %c0_i32 = arith.constant 0 : i32
    %c0_i32_0 = arith.constant 0 : i32
    %c0_i32_1 = arith.constant 0 : i32
    return %c0_i32, %arg0, %c0_i32_0 : i32, i32, i32
  }
}

</mosaic_0001>

<llo_original>
// kernel: tpu_custom_call.1
$region0: #{tpu_custom_call.1}
  #allocation0 [shape = 'u32[]', space=smem, size = 0x4, offset = 0x4, fixed_abs, tag = 'smem constant byte address 0x4 - core index']
  #allocation1 [shape = 'u32[144,128]{1,0:T(1,128)}', space=vmem, size = 0x12000, scoped, tag = 'internal scratch']
  %s0 = inlined_call_operand.hbm [shape: f32[115], index: 0, kind: input, shape index: {}]
  %s1 = inlined_call_operand.hbm [shape: f32[4,8,128], index: 1, kind: input, shape index: {}]
  %s2 = inlined_call_operand.hbm [shape: f32[3,8,128], index: 2, kind: output, shape index: {}]
  %s3 = sld [smem:[#allocation0]]
  $region26: #{tpu_custom_call.1} parent=0
    _
  %s5 = ssub.s32 1, %s3
  %s6 = scalar_select 0, %s5, %s3
  $region1: #{tpu_custom_call.1} parent=0
    #allocation2 [shape = 'u8[512]{0}', space=smem, size = 0x200, scoped, tag = 'input window, operand 0, single buffered']
    #allocation3 [shape = 's32[1]{0}', space=sflag, size = 0x4, scoped, tag = 'scoped memory for tpu_custom_call.1']
    #allocation4 [shape = 's32[1]{0}', space=sflag, size = 0x4, scoped, tag = 'scoped memory for tpu_custom_call.1']
    #allocation5 [shape = 's32[1]{0}', space=sflag, size = 0x4, scoped, tag = 'scoped memory for tpu_custom_call.1']
    #allocation6 [shape = 'u8[16384]{0}', space=vmem, size = 0x4000, scoped, tag = 'input window, operand 1, single buffered']
    #allocation7 [shape = 'u8[12288]{0}', space=vmem, size = 0x3000, scoped, tag = 'output window, operand 0, single buffered']
    %7 = vsyncpa [#allocation5], 0
    %8 = vsyncpa [#allocation3], 0
    %9 = vsyncpa [#allocation4], 0
    // Predicated region
    $region2: #{tpu_custom_call.1} parent=1 // pred_check
      _
    $region3: #{tpu_custom_call.1} parent=1 // pred_check_branch
      %11 = sbr.rel (0) target = $region5
    $region4: #{tpu_custom_call.1} parent=1 // pred_region
      %s13 = ssub.s32 16, 16
      %14 = vsyncadd [#allocation5], %s13
      %17 = dma.hbm_to_smem %s0, 16, [#allocation2], [#allocation5]
    $region5: #{tpu_custom_call.1} parent=1 // pred_fallthru
      _
    // Predicated region
    $region6: #{tpu_custom_call.1} parent=1 // pred_check
      _
    $region7: #{tpu_custom_call.1} parent=1 // pred_check_branch
      %19 = sbr.rel (0) target = $region9
    $region8: #{tpu_custom_call.1} parent=1 // pred_region
      %s21 = ssub.s32 512, 512
      %22 = vsyncadd [#allocation3], %s21
      %s23 = sshll.u32 [#allocation6], 4
      %s24 = int_to_ptr.vmem [resolvable:$true] %s23
      %29 = dma.hbm_to_vmem [thread:$0]  %s1, 512, %s24, [#allocation3], 128, 128, 8
    $region9: #{tpu_custom_call.1} parent=1 // pred_fallthru
      _
    // Predicated region
    $region10: #{tpu_custom_call.1} parent=1 // pred_check
      _
    $region11: #{tpu_custom_call.1} parent=1 // pred_check_branch
      %31 = sbr.rel (0) target = $region13
    $region12: #{tpu_custom_call.1} parent=1 // pred_region
      %32 = dma.done [#allocation5], 16
    $region13: #{tpu_custom_call.1} parent=1 // pred_fallthru
      _
    // Predicated region
    $region14: #{tpu_custom_call.1} parent=1 // pred_check
      _
    $region15: #{tpu_custom_call.1} parent=1 // pred_check_branch
      %34 = sbr.rel (0) target = $region17
    $region16: #{tpu_custom_call.1} parent=1 // pred_region
      %35 = dma.done [#allocation3], 512
    $region17: #{tpu_custom_call.1} parent=1 // pred_fallthru
      _
    %36 = sfence
    %s37 = sld [smem:[#allocation2]]
    %s38 = sld [smem:[#allocation2 + $0x1]]
    %s39 = sld [smem:[#allocation2 + $0x2]]
    %s40 = sld [smem:[#allocation2 + $0x3]]
    %s41 = sld [smem:[#allocation2 + $0x4]]
    %s42 = sld [smem:[#allocation2 + $0x5]]
    %s43 = sld [smem:[#allocation2 + $0x6]]
    %s44 = sld [smem:[#allocation2 + $0x7]]
    %s45 = sld [smem:[#allocation2 + $0x8]]
    %s46 = sld [smem:[#allocation2 + $0x9]]
    %s47 = sld [smem:[#allocation2 + $0xa]]
    %s48 = sld [smem:[#allocation2 + $0xb]]
    %s49 = sld [smem:[#allocation2 + $0xc]]
    %s50 = sld [smem:[#allocation2 + $0xd]]
    %s51 = sld [smem:[#allocation2 + $0xe]]
    %s52 = sld [smem:[#allocation2 + $0xf]]
    %s53 = sld [smem:[#allocation2 + $0x10]]
    %s54 = sld [smem:[#allocation2 + $0x11]]
    %s55 = sld [smem:[#allocation2 + $0x12]]
    %s56 = sld [smem:[#allocation2 + $0x13]]
    %s57 = sld [smem:[#allocation2 + $0x14]]
    %s58 = sld [smem:[#allocation2 + $0x15]]
    %s59 = sld [smem:[#allocation2 + $0x16]]
    %s60 = sld [smem:[#allocation2 + $0x17]]
    %s61 = sld [smem:[#allocation2 + $0x18]]
    %s62 = sld [smem:[#allocation2 + $0x19]]
    %s63 = sld [smem:[#allocation2 + $0x1a]]
    %s64 = sld [smem:[#allocation2 + $0x1b]]
    %s65 = sld [smem:[#allocation2 + $0x1c]]
    %s66 = sld [smem:[#allocation2 + $0x1d]]
    %s67 = sld [smem:[#allocation2 + $0x1e]]
    %s68 = sld [smem:[#allocation2 + $0x1f]]
    %s69 = sld [smem:[#allocation2 + $0x20]]
    %s70 = sld [smem:[#allocation2 + $0x21]]
    %s71 = sld [smem:[#allocation2 + $0x22]]
    %s72 = sld [smem:[#allocation2 + $0x23]]
    %s73 = sld [smem:[#allocation2 + $0x24]]
    %s74 = sld [smem:[#allocation2 + $0x25]]
    %s75 = sld [smem:[#allocation2 + $0x26]]
    %s76 = sld [smem:[#allocation2 + $0x27]]
    %s77 = sld [smem:[#allocation2 + $0x28]]
    %s78 = sld [smem:[#allocation2 + $0x29]]
    %s79 = sld [smem:[#allocation2 + $0x2a]]
    %s80 = sld [smem:[#allocation2 + $0x2b]]
    %s81 = sld [smem:[#allocation2 + $0x2c]]
    %s82 = sld [smem:[#allocation2 + $0x2d]]
    %s83 = sld [smem:[#allocation2 + $0x2e]]
    %s84 = sld [smem:[#allocation2 + $0x2f]]
    %s85 = sld [smem:[#allocation2 + $0x30]]
    %s86 = sld [smem:[#allocation2 + $0x31]]
    %s87 = sld [smem:[#allocation2 + $0x32]]
    %s88 = sld [smem:[#allocation2 + $0x33]]
    %s89 = sld [smem:[#allocation2 + $0x34]]
    %s90 = sld [smem:[#allocation2 + $0x35]]
    %s91 = sld [smem:[#allocation2 + $0x36]]
    %s92 = sld [smem:[#allocation2 + $0x37]]
    %s93 = sld [smem:[#allocation2 + $0x38]]
    %s94 = sld [smem:[#allocation2 + $0x39]]
    %s95 = sld [smem:[#allocation2 + $0x3a]]
    %s96 = sld [smem:[#allocation2 + $0x3b]]
    %s97 = sld [smem:[#allocation2 + $0x3c]]
    %s98 = sld [smem:[#allocation2 + $0x3d]]
    %s99 = sld [smem:[#allocation2 + $0x3e]]
    %s100 = sld [smem:[#allocation2 + $0x3f]]
    %s101 = sld [smem:[#allocation2 + $0x40]]
    %s102 = sld [smem:[#allocation2 + $0x41]]
    %s103 = sld [smem:[#allocation2 + $0x42]]
    %s104 = sld [smem:[#allocation2 + $0x43]]
    %s105 = sld [smem:[#allocation2 + $0x44]]
    %s106 = sld [smem:[#allocation2 + $0x45]]
    %s107 = sld [smem:[#allocation2 + $0x46]]
    %s108 = sld [smem:[#allocation2 + $0x47]]
    %s109 = sld [smem:[#allocation2 + $0x48]]
    %s110 = sld [smem:[#allocation2 + $0x49]]
    %s111 = sld [smem:[#allocation2 + $0x4a]]
    %s112 = sld [smem:[#allocation2 + $0x4b]]
    %s113 = sld [smem:[#allocation2 + $0x4c]]
    %s114 = sld [smem:[#allocation2 + $0x4d]]
    %s115 = sld [smem:[#allocation2 + $0x4e]]
    %s116 = sld [smem:[#allocation2 + $0x4f]]
    %s117 = sld [smem:[#allocation2 + $0x50]]
    %s118 = sld [smem:[#allocation2 + $0x51]]
    %s119 = sld [smem:[#allocation2 + $0x52]]
    %s120 = sld [smem:[#allocation2 + $0x53]]
    %s121 = sld [smem:[#allocation2 + $0x54]]
    %s122 = sld [smem:[#allocation2 + $0x55]]
    %s123 = sld [smem:[#allocation2 + $0x56]]
    %s124 = sld [smem:[#allocation2 + $0x57]]
    %s125 = sld [smem:[#allocation2 + $0x58]]
    %s126 = sld [smem:[#allocation2 + $0x59]]
    %s127 = sld [smem:[#allocation2 + $0x5a]]
    %s128 = sld [smem:[#allocation2 + $0x5b]]
    %s129 = sld [smem:[#allocation2 + $0x5c]]
    %s130 = sld [smem:[#allocation2 + $0x5d]]
    %s131 = sld [smem:[#allocation2 + $0x5e]]
    %s132 = sld [smem:[#allocation2 + $0x5f]]
    %s133 = sld [smem:[#allocation2 + $0x60]]
    %s134 = sld [smem:[#allocation2 + $0x61]]
    %s135 = sld [smem:[#allocation2 + $0x62]]
    %s136 = sld [smem:[#allocation2 + $0x63]]
    %s137 = sld [smem:[#allocation2 + $0x64]]
    %s138 = sld [smem:[#allocation2 + $0x65]]
    %s139 = sld [smem:[#allocation2 + $0x66]]
    %s140 = sld [smem:[#allocation2 + $0x67]]
    %s141 = sld [smem:[#allocation2 + $0x68]]
    %s142 = sld [smem:[#allocation2 + $0x69]]
    %s143 = sld [smem:[#allocation2 + $0x6a]]
    %s144 = sld [smem:[#allocation2 + $0x6b]]
    %s145 = sld [smem:[#allocation2 + $0x6c]]
    %s146 = sld [smem:[#allocation2 + $0x6d]]
    %s147 = sld [smem:[#allocation2 + $0x6e]]
    %s148 = sld [smem:[#allocation2 + $0x6f]]
    %s149 = sld [smem:[#allocation2 + $0x70]]
    %s150 = sld [smem:[#allocation2 + $0x71]]
    %s151 = sld [smem:[#allocation2 + $0x72]]
    %v152 = vld [vmem:[#allocation6] sm:$0xff]
    %s153 = scalar_lea.vmem [#allocation6], 8
    %v154 = vld [vmem:[%s153] sm:$0xff]
    %s155 = scalar_lea.vmem [#allocation6], 16
    %v156 = vld [vmem:[%s155] sm:$0xff]
    %s157 = scalar_lea.vmem [#allocation6], 24
    %v158 = vld [vmem:[%s157] sm:$0xff]
    %v159 = vstv %s37
    %v160 = vmul.f32 %v152, %v159
    %v161 = vstv %s44
    %v162 = vmul.f32 %v154, %v161
    %v163 = vadd.f32 %v160, %v162
    %v164 = vstv %s51
    %v165 = vmul.f32 %v156, %v164
    %v166 = vadd.f32 %v163, %v165
    %v167 = vstv %s58
    %v168 = vmul.f32 %v158, %v167
    %v169 = vadd.f32 %v166, %v168
    %v170 = vstv %s65
    %v171 = vadd.f32 %v169, %v170
    %v172 = vmax.f32 %v171, 0.0
    %v173 = vstv %s38
    %v174 = vmul.f32 %v152, %v173
    %v175 = vstv %s45
    %v176 = vmul.f32 %v154, %v175
    %v177 = vadd.f32 %v174, %v176
    %v178 = vstv %s52
    %v179 = vmul.f32 %v156, %v178
    %v180 = vadd.f32 %v177, %v179
    %v181 = vstv %s59
    %v182 = vmul.f32 %v158, %v181
    %v183 = vadd.f32 %v180, %v182
    %v184 = vstv %s66
    %v185 = vadd.f32 %v183, %v184
    %v186 = vmax.f32 %v185, 0.0
    %v187 = vstv %s39
    %v188 = vmul.f32 %v152, %v187
    %v189 = vstv %s46
    %v190 = vmul.f32 %v154, %v189
    %v191 = vadd.f32 %v188, %v190
    %v192 = vstv %s53
    %v193 = vmul.f32 %v156, %v192
    %v194 = vadd.f32 %v191, %v193
    %v195 = vstv %s60
    %v196 = vmul.f32 %v158, %v195
    %v197 = vadd.f32 %v194, %v196
    %v198 = vstv %s67
    %v199 = vadd.f32 %v197, %v198
    %v200 = vmax.f32 %v199, 0.0
    %v201 = vstv %s40
    %v202 = vmul.f32 %v152, %v201
    %v203 = vstv %s47
    %v204 = vmul.f32 %v154, %v203
    %v205 = vadd.f32 %v202, %v204
    %v206 = vstv %s54
    %v207 = vmul.f32 %v156, %v206
    %v208 = vadd.f32 %v205, %v207
    %v209 = vstv %s61
    %v210 = vmul.f32 %v158, %v209
    %v211 = vadd.f32 %v208, %v210
    %v212 = vstv %s68
    %v213 = vadd.f32 %v211, %v212
    %v214 = vmax.f32 %v213, 0.0
    %v215 = vstv %s41
    %v216 = vmul.f32 %v152, %v215
    %v217 = vstv %s48
    %v218 = vmul.f32 %v154, %v217
    %v219 = vadd.f32 %v216, %v218
    %v220 = vstv %s55
    %v221 = vmul.f32 %v156, %v220
    %v222 = vadd.f32 %v219, %v221
    %v223 = vstv %s62
    %v224 = vmul.f32 %v158, %v223
    %v225 = vadd.f32 %v222, %v224
    %v226 = vstv %s69
    %v227 = vadd.f32 %v225, %v226
    %v228 = vmax.f32 %v227, 0.0
    %v229 = vstv %s42
    %v230 = vmul.f32 %v152, %v229
    %v231 = vstv %s49
    %v232 = vmul.f32 %v154, %v231
    %v233 = vadd.f32 %v230, %v232
    %v234 = vstv %s56
    %v235 = vmul.f32 %v156, %v234
    %v236 = vadd.f32 %v233, %v235
    %v237 = vstv %s63
    %v238 = vmul.f32 %v158, %v237
    %v239 = vadd.f32 %v236, %v238
    %v240 = vstv %s70
    %v241 = vadd.f32 %v239, %v240
    %v242 = vmax.f32 %v241, 0.0
    %v243 = vstv %s43
    %v244 = vmul.f32 %v152, %v243
    %v245 = vstv %s50
    %v246 = vmul.f32 %v154, %v245
    %v247 = vadd.f32 %v244, %v246
    %v248 = vstv %s57
    %v249 = vmul.f32 %v156, %v248
    %v250 = vadd.f32 %v247, %v249
    %v251 = vstv %s64
    %v252 = vmul.f32 %v158, %v251
    %v253 = vadd.f32 %v250, %v252
    %v254 = vstv %s71
    %v255 = vadd.f32 %v253, %v254
    %v256 = vmax.f32 %v255, 0.0
    %v257 = vstv %s72
    %v258 = vmul.f32 %v172, %v257
    %v259 = vstv %s79
    %v260 = vmul.f32 %v186, %v259
    %v261 = vadd.f32 %v258, %v260
    %v262 = vstv %s86
    %v263 = vmul.f32 %v200, %v262
    %v264 = vadd.f32 %v261, %v263
    %v265 = vstv %s93
    %v266 = vmul.f32 %v214, %v265
    %v267 = vadd.f32 %v264, %v266
    %v268 = vstv %s100
    %v269 = vmul.f32 %v228, %v268
    %v270 = vadd.f32 %v267, %v269
    %v271 = vstv %s107
    %v272 = vmul.f32 %v242, %v271
    %v273 = vadd.f32 %v270, %v272
    %v274 = vstv %s114
    %v275 = vmul.f32 %v256, %v274
    %v276 = vadd.f32 %v273, %v275
    %v277 = vstv %s121
    %v278 = vadd.f32 %v276, %v277
    %v279 = vmax.f32 %v278, 0.0
    %v280 = vstv %s73
    %v281 = vmul.f32 %v172, %v280
    %v282 = vstv %s80
    %v283 = vmul.f32 %v186, %v282
    %v284 = vadd.f32 %v281, %v283
    %v285 = vstv %s87
    %v286 = vmul.f32 %v200, %v285
    %v287 = vadd.f32 %v284, %v286
    %v288 = vstv %s94
    %v289 = vmul.f32 %v214, %v288
    %v290 = vadd.f32 %v287, %v289
    %v291 = vstv %s101
    %v292 = vmul.f32 %v228, %v291
    %v293 = vadd.f32 %v290, %v292
    %v294 = vstv %s108
    %v295 = vmul.f32 %v242, %v294
    %v296 = vadd.f32 %v293, %v295
    %v297 = vstv %s115
    %v298 = vmul.f32 %v256, %v297
    %v299 = vadd.f32 %v296, %v298
    %v300 = vstv %s122
    %v301 = vadd.f32 %v299, %v300
    %v302 = vmax.f32 %v301, 0.0
    %v303 = vstv %s74
    %v304 = vmul.f32 %v172, %v303
    %v305 = vstv %s81
    %v306 = vmul.f32 %v186, %v305
    %v307 = vadd.f32 %v304, %v306
    %v308 = vstv %s88
    %v309 = vmul.f32 %v200, %v308
    %v310 = vadd.f32 %v307, %v309
    %v311 = vstv %s95
    %v312 = vmul.f32 %v214, %v311
    %v313 = vadd.f32 %v310, %v312
    %v314 = vstv %s102
    %v315 = vmul.f32 %v228, %v314
    %v316 = vadd.f32 %v313, %v315
    %v317 = vstv %s109
    %v318 = vmul.f32 %v242, %v317
    %v319 = vadd.f32 %v316, %v318
    %v320 = vstv %s116
    %v321 = vmul.f32 %v256, %v320
    %v322 = vadd.f32 %v319, %v321
    %v323 = vstv %s123
    %v324 = vadd.f32 %v322, %v323
    %v325 = vmax.f32 %v324, 0.0
    %v326 = vstv %s75
    %v327 = vmul.f32 %v172, %v326
    %v328 = vstv %s82
    %v329 = vmul.f32 %v186, %v328
    %v330 = vadd.f32 %v327, %v329
    %v331 = vstv %s89
    %v332 = vmul.f32 %v200, %v331
    %v333 = vadd.f32 %v330, %v332
    %v334 = vstv %s96
    %v335 = vmul.f32 %v214, %v334
    %v336 = vadd.f32 %v333, %v335
    %v337 = vstv %s103
    %v338 = vmul.f32 %v228, %v337
    %v339 = vadd.f32 %v336, %v338
    %v340 = vstv %s110
    %v341 = vmul.f32 %v242, %v340
    %v342 = vadd.f32 %v339, %v341
    %v343 = vstv %s117
    %v344 = vmul.f32 %v256, %v343
    %v345 = vadd.f32 %v342, %v344
    %v346 = vstv %s124
    %v347 = vadd.f32 %v345, %v346
    %v348 = vmax.f32 %v347, 0.0
    %v349 = vstv %s76
    %v350 = vmul.f32 %v172, %v349
    %v351 = vstv %s83
    %v352 = vmul.f32 %v186, %v351
    %v353 = vadd.f32 %v350, %v352
    %v354 = vstv %s90
    %v355 = vmul.f32 %v200, %v354
    %v356 = vadd.f32 %v353, %v355
    %v357 = vstv %s97
    %v358 = vmul.f32 %v214, %v357
    %v359 = vadd.f32 %v356, %v358
    %v360 = vstv %s104
    %v361 = vmul.f32 %v228, %v360
    %v362 = vadd.f32 %v359, %v361
    %v363 = vstv %s111
    %v364 = vmul.f32 %v242, %v363
    %v365 = vadd.f32 %v362, %v364
    %v366 = vstv %s118
    %v367 = vmul.f32 %v256, %v366
    %v368 = vadd.f32 %v365, %v367
    %v369 = vstv %s125
    %v370 = vadd.f32 %v368, %v369
    %v371 = vmax.f32 %v370, 0.0
    %v372 = vstv %s77
    %v373 = vmul.f32 %v172, %v372
    %v374 = vstv %s84
    %v375 = vmul.f32 %v186, %v374
    %v376 = vadd.f32 %v373, %v375
    %v377 = vstv %s91
    %v378 = vmul.f32 %v200, %v377
    %v379 = vadd.f32 %v376, %v378
    %v380 = vstv %s98
    %v381 = vmul.f32 %v214, %v380
    %v382 = vadd.f32 %v379, %v381
    %v383 = vstv %s105
    %v384 = vmul.f32 %v228, %v383
    %v385 = vadd.f32 %v382, %v384
    %v386 = vstv %s112
    %v387 = vmul.f32 %v242, %v386
    %v388 = vadd.f32 %v385, %v387
    %v389 = vstv %s119
    %v390 = vmul.f32 %v256, %v389
    %v391 = vadd.f32 %v388, %v390
    %v392 = vstv %s126
    %v393 = vadd.f32 %v391, %v392
    %v394 = vmax.f32 %v393, 0.0
    %v395 = vstv %s78
    %v396 = vmul.f32 %v172, %v395
    %v397 = vstv %s85
    %v398 = vmul.f32 %v186, %v397
    %v399 = vadd.f32 %v396, %v398
    %v400 = vstv %s92
    %v401 = vmul.f32 %v200, %v400
    %v402 = vadd.f32 %v399, %v401
    %v403 = vstv %s99
    %v404 = vmul.f32 %v214, %v403
    %v405 = vadd.f32 %v402, %v404
    %v406 = vstv %s106
    %v407 = vmul.f32 %v228, %v406
    %v408 = vadd.f32 %v405, %v407
    %v409 = vstv %s113
    %v410 = vmul.f32 %v242, %v409
    %v411 = vadd.f32 %v408, %v410
    %v412 = vstv %s120
    %v413 = vmul.f32 %v256, %v412
    %v414 = vadd.f32 %v411, %v413
    %v415 = vstv %s127
    %v416 = vadd.f32 %v414, %v415
    %v417 = vmax.f32 %v416, 0.0
    %v418 = vstv %s128
    %v419 = vmul.f32 %v279, %v418
    %v420 = vstv %s131
    %v421 = vmul.f32 %v302, %v420
    %v422 = vadd.f32 %v419, %v421
    %v423 = vstv %s134
    %v424 = vmul.f32 %v325, %v423
    %v425 = vadd.f32 %v422, %v424
    %v426 = vstv %s137
    %v427 = vmul.f32 %v348, %v426
    %v428 = vadd.f32 %v425, %v427
    %v429 = vstv %s140
    %v430 = vmul.f32 %v371, %v429
    %v431 = vadd.f32 %v428, %v430
    %v432 = vstv %s143
    %v433 = vmul.f32 %v394, %v432
    %v434 = vadd.f32 %v431, %v433
    %v435 = vstv %s146
    %v436 = vmul.f32 %v417, %v435
    %v437 = vadd.f32 %v434, %v436
    %v438 = vstv %s149
    %v439 = vadd.f32 %v437, %v438
    %v440 = vstv %s129
    %v441 = vmul.f32 %v279, %v440
    %v442 = vstv %s132
    %v443 = vmul.f32 %v302, %v442
    %v444 = vadd.f32 %v441, %v443
    %v445 = vstv %s135
    %v446 = vmul.f32 %v325, %v445
    %v447 = vadd.f32 %v444, %v446
    %v448 = vstv %s138
    %v449 = vmul.f32 %v348, %v448
    %v450 = vadd.f32 %v447, %v449
    %v451 = vstv %s141
    %v452 = vmul.f32 %v371, %v451
    %v453 = vadd.f32 %v450, %v452
    %v454 = vstv %s144
    %v455 = vmul.f32 %v394, %v454
    %v456 = vadd.f32 %v453, %v455
    %v457 = vstv %s147
    %v458 = vmul.f32 %v417, %v457
    %v459 = vadd.f32 %v456, %v458
    %v460 = vstv %s150
    %v461 = vadd.f32 %v459, %v460
    %v462 = vstv %s130
    %v463 = vmul.f32 %v279, %v462
    %v464 = vstv %s133
    %v465 = vmul.f32 %v302, %v464
    %v466 = vadd.f32 %v463, %v465
    %v467 = vstv %s136
    %v468 = vmul.f32 %v325, %v467
    %v469 = vadd.f32 %v466, %v468
    %v470 = vstv %s139
    %v471 = vmul.f32 %v348, %v470
    %v472 = vadd.f32 %v469, %v471
    %v473 = vstv %s142
    %v474 = vmul.f32 %v371, %v473
    %v475 = vadd.f32 %v472, %v474
    %v476 = vstv %s145
    %v477 = vmul.f32 %v394, %v476
    %v478 = vadd.f32 %v475, %v477
    %v479 = vstv %s148
    %v480 = vmul.f32 %v417, %v479
    %v481 = vadd.f32 %v478, %v480
    %v482 = vstv %s151
    %v483 = vadd.f32 %v481, %v482
    %484 = vst [vmem:[#allocation7] sm:$0xff] %v439
    %s485 = scalar_lea.vmem [#allocation7], 8
    %486 = vst [vmem:[%s485] sm:$0xff] %v461
    %s487 = scalar_lea.vmem [#allocation7], 16
    %488 = vst [vmem:[%s487] sm:$0xff] %v483
    // Predicated region
    $region18: #{tpu_custom_call.1} parent=1 // pred_check
      _
    $region19: #{tpu_custom_call.1} parent=1 // pred_check_branch
      %490 = sbr.rel (0) target = $region21
    $region20: #{tpu_custom_call.1} parent=1 // pred_region
      %s492 = ssub.s32 384, 384
      %493 = vsyncadd [#allocation4], %s492
      %s494 = sshll.u32 [#allocation7], 4
      %s495 = int_to_ptr.vmem [resolvable:$true] %s494
      %500 = dma.vmem_to_hbm [thread:$0]  %s495, 384, %s2, [#allocation4], 128, 128, 8
    $region21: #{tpu_custom_call.1} parent=1 // pred_fallthru
      _
    // Predicated region
    $region22: #{tpu_custom_call.1} parent=1 // pred_check
      _
    $region23: #{tpu_custom_call.1} parent=1 // pred_check_branch
      %502 = sbr.rel (0) target = $region25
    $region24: #{tpu_custom_call.1} parent=1 // pred_region
      %503 = dma.done [#allocation4], 384
    $region25: #{tpu_custom_call.1} parent=1 // pred_fallthru
      _
    %504 = vsyncpa [#allocation3], 1
    %505 = vsyncpa [#allocation4], 1
    %506 = vsyncpa [#allocation5], 1

</llo_original>
